<compile_context>
chip_gen: v7x
topology: tpu7x:2x2x1
jax: 0.10.0
libtpu: 0.0.40
codegen_flags: <defaults>
</compile_context>

<pallas_src>
import functools

import jax
import jax.numpy as jnp
from jax.experimental import pallas as pl
from jax.experimental.pallas import tpu as pltpu

_EPS = 1e-6                # matches torch.nn.functional.pairwise_distance default eps
_LANE = 128
_SUBLANE = 8

# Total live-VMEM target per grid step (both pipeline buffers of every operand plus
# scratch).  ~20 MiB stays inside v6e/v7x's 32 MiB scoped default and well inside
# v7x's 64 MiB physical VMEM; v5e's 16 MiB scoped default is raised explicitly below.
_TARGET_LIVE_VMEM_BYTES = 20 * 1024 * 1024
_VMEM_LIMIT_BYTES = 48 * 1024 * 1024


def _dim_reduction_loss_kernel(fl_ref, fr_ref, lab_ref, out_ref, acc_ref, *,
                               margin, total_rows, block_rows,
                               tiles_per_core, num_tiles, need_mask):
    c = pl.program_id(0)   # partial-sum / core axis ("parallel")
    i = pl.program_id(1)   # streaming reduction axis ("arbitrary")

    @pl.when(i == 0)
    def _init():
        acc_ref[...] = jnp.zeros_like(acc_ref)

    fl = fl_ref[...].astype(jnp.float32)          # (TB, D)
    fr = fr_ref[...].astype(jnp.float32)          # (TB, D)
    lab = lab_ref[...].astype(jnp.float32)        # (TB, 1)

    # pairwise_distance adds eps to (x - y)
    diff = fl - fr + _EPS
    dist2 = jnp.sum(diff * diff, axis=-1, keepdims=True)     # (TB, 1) == d^2
    dist = jnp.sqrt(dist2)                                    # (TB, 1) == d

    # 0.5 * label * d^2 + (1 - label) * clamp(margin - d, 0)^2
    per_pair = (0.5 * lab * dist2
                + (1.0 - lab) * jnp.square(
                    jnp.maximum(jnp.float32(margin) - dist, 0.0)))   # (TB, 1)

    if need_mask:
        gt = c * tiles_per_core + i                # global (unclamped) tile index
        is_edge = gt >= (num_tiles - 1)            # last real tile or phantom tile

        @pl.when(is_edge)
        def _masked():
            row = gt * block_rows + jax.lax.broadcasted_iota(
                jnp.int32, per_pair.shape, 0)
            acc_ref[...] += jnp.where(row < total_rows, per_pair, 0.0)

        @pl.when(jnp.logical_not(is_edge))
        def _full():
            acc_ref[...] += per_pair
    else:
        acc_ref[...] += per_pair

    @pl.when(i == pl.num_programs(1) - 1)
    def _finalize():
        # Single sublane reduction per partial; the 1/B divide happens in the wrapper.
        out_ref[...] = jnp.sum(acc_ref[...], axis=(0, 1), keepdims=True)


def _pick_block_rows(B, D, requested=None):
    """8-aligned batch tile, budgeted against lane-padded live VMEM (~20 MiB)."""
    if requested is not None:
        tb = int(requested)
    else:
        feat_row_bytes = pl.cdiv(max(D, 1), _LANE) * _LANE * 4   # (tb, D) lane-padded, f32 worst case
        label_row_bytes = _LANE * 4                               # (tb, 1) pads to 128 lanes
        acc_row_bytes = _LANE * 4                                 # (tb, 1) f32 scratch
        live_per_row = 2 * (2 * feat_row_bytes + label_row_bytes) + acc_row_bytes
        tb = max(_SUBLANE,
                 (_TARGET_LIVE_VMEM_BYTES // live_per_row) // _SUBLANE * _SUBLANE)
    tb = min(tb, B)
    if tb < B:
        tb = max(_SUBLANE, (tb // _SUBLANE) * _SUBLANE)   # sub-array blocks: sublane aligned
    return tb


def dim_reduction_loss(feature_l, feature_r, label, margin=1.0, block_rows=None):
    """Pallas TPU contrastive loss. feature_l/feature_r: (B, D); label: (B, 1)."""
    B, D = feature_l.shape
    assert feature_r.shape == (B, D)
    assert label.shape == (B, 1)

    tb = _pick_block_rows(B, D, block_rows)
    num_tiles = pl.cdiv(B, tb)

    # Split the streaming reduction into up to 2 partial sums so multi-TensorCore
    # parts (v7x, megacore) can shard the "parallel" axis; on single-TC chips this
    # is just a serial outer loop with negligible overhead.
    ncores = min(2, num_tiles)
    tiles_per_core = pl.cdiv(num_tiles, ncores)
    total_grid_tiles = ncores * tiles_per_core
    has_phantom = total_grid_tiles > num_tiles
    need_mask = (B % tb != 0) or has_phantom

    if has_phantom:
        def feat_map(c, i):
            return (jnp.minimum(c * tiles_per_core + i, num_tiles - 1), 0)
    else:
        def feat_map(c, i):
            return (c * tiles_per_core + i, 0)

    kernel = functools.partial(
        _dim_reduction_loss_kernel,
        margin=float(margin),
        total_rows=B,
        block_rows=tb,
        tiles_per_core=tiles_per_core,
        num_tiles=num_tiles,
        need_mask=need_mask,
    )

    itemsize = jnp.dtype(feature_l.dtype).itemsize
    cost = pl.CostEstimate(
        flops=int(B * (3 * D + 10)),
        transcendentals=int(B),
        bytes_accessed=int((2 * B * D + 2 * B) * itemsize + ncores * 4),
    )

    partials = pl.pallas_call(
        kernel,
        out_shape=jax.ShapeDtypeStruct((ncores, 1), jnp.float32),
        grid_spec=pltpu.PrefetchScalarGridSpec(
            num_scalar_prefetch=0,
            grid=(ncores, tiles_per_core),
            in_specs=[
                pl.BlockSpec((tb, D), feat_map),   # feature_l tile
                pl.BlockSpec((tb, D), feat_map),   # feature_r tile
                pl.BlockSpec((tb, 1), feat_map),   # label tile
            ],
            out_specs=pl.BlockSpec((1, 1), lambda c, i: (c, 0)),  # per-partial accumulator
            scratch_shapes=[pltpu.VMEM((tb, 1), jnp.float32)],    # per-row loss accumulator
        ),
        compiler_params=pltpu.CompilerParams(
            dimension_semantics=("parallel", "arbitrary"),
            vmem_limit_bytes=_VMEM_LIMIT_BYTES,
        ),
        cost_estimate=cost,
    )(feature_l, feature_r, label)

    return jnp.sum(partials) / jnp.float32(B)


def _reference(feature_l, feature_r, label, margin=1.0):
    """Plain-JAX reference mirroring the PyTorch forward."""
    diff = feature_l - feature_r + _EPS
    dist = jnp.sqrt(jnp.sum(diff * diff, axis=-1, keepdims=True))
    loss = 0.5 * label * dist**2 + (1.0 - label) * jnp.maximum(margin - dist, 0.0) ** 2
    return jnp.mean(loss)


if __name__ == "__main__":
    key = jax.random.PRNGKey(0)
    k1, k2, k3, k4, k5, k6 = jax.random.split(key, 6)

    # Small shapes consistent with the module: 8 pairs of 32-dim embeddings.
    B, D = 8, 32
    feature_l = jax.random.normal(k1, (B, D), dtype=jnp.float32)
    feature_r = jax.random.normal(k2, (B, D), dtype=jnp.float32)
    label = jax.random.bernoulli(k3, p=0.5, shape=(B, 1)).astype(jnp.float32)

    loss = jax.block_until_ready(dim_reduction_loss(feature_l, feature_r, label, margin=1.0))
    ref = _reference(feature_l, feature_r, label, margin=1.0)
    assert jnp.allclose(loss, ref, rtol=1e-5, atol=1e-6), (loss, ref)

    # Larger batch exercising the tiled grid, 2-way partial split and tail masking.
    B2, D2 = 1000, 128
    fl2 = jax.random.normal(k4, (B2, D2), dtype=jnp.float32)
    fr2 = jax.random.normal(k5, (B2, D2), dtype=jnp.float32)
    lab2 = jax.random.bernoulli(k6, p=0.5, shape=(B2, 1)).astype(jnp.float32)
    ref2 = _reference(fl2, fr2, lab2, margin=1.0)

    # 4 tiles over 2 partials, tail-masked last tile (1000 = 3*256 + 232).
    loss2 = jax.block_until_ready(dim_reduction_loss(fl2, fr2, lab2, margin=1.0, block_rows=256))
    assert jnp.allclose(loss2, ref2, rtol=1e-5, atol=1e-6), (loss2, ref2)

    # 3 tiles over 2 partials -> one phantom (clamped + fully masked) tile.
    loss3 = jax.block_until_ready(dim_reduction_loss(fl2, fr2, lab2, margin=1.0, block_rows=384))
    assert jnp.allclose(loss3, ref2, rtol=1e-5, atol=1e-6), (loss3, ref2)

    # Auto-sized (VMEM-budgeted) path: whole batch in one tile.
    loss4 = jax.block_until_ready(dim_reduction_loss(fl2, fr2, lab2, margin=1.0))
    assert jnp.allclose(loss4, ref2, rtol=1e-5, atol=1e-6), (loss4, ref2)

    print("KERNEL_OK")
</pallas_src>

<mosaic_0001>
module attributes {stable_mosaic.version = 11 : i64} {
  func.func @_dim_reduction_loss_kernel(%arg0: i32, %arg1: i32, %arg2: memref<8x32xf32, #tpu.memory_space<vmem>>, %arg3: memref<8x32xf32, #tpu.memory_space<vmem>>, %arg4: memref<8x1xf32, #tpu.memory_space<vmem>>, %arg5: memref<1x1xf32, #tpu.memory_space<vmem>>, %arg6: memref<8x1xf32, #tpu.memory_space<vmem>>) attributes {dimension_semantics = [#tpu.dimension_semantics<parallel>, #tpu.dimension_semantics<arbitrary>], iteration_bounds = array<i64: 1, 1>, scalar_prefetch = 0 : i64, scratch_operands = 1 : i64, tpu.core_type = #tpu.core_type<tc>, window_params = [{transform_indices = @transform_0, window_bounds = array<i64: 8, 32>}, {transform_indices = @transform_1, window_bounds = array<i64: 8, 32>}, {transform_indices = @transform_2, window_bounds = array<i64: 8, 1>}, {transform_indices = @transform_3, window_bounds = array<i64: 1, 1>}]} {
    %c0_i32 = arith.constant 0 : i32
    %0 = arith.cmpi eq, %arg1, %c0_i32 : i32
    %1 = arith.extui %0 : i1 to i32
    %c0_i32_0 = arith.constant 0 : i32
    %2 = arith.cmpi ne, %1, %c0_i32_0 : i32
    scf.if %2 {
      %cst_17 = arith.constant 0.000000e+00 : f32
      %31 = vector.broadcast %cst_17 : f32 to vector<8x1xf32>
      %c0_18 = arith.constant 0 : index
      %c0_19 = arith.constant 0 : index
      %32 = vector.load %arg6[%c0_18, %c0_19] : memref<8x1xf32, #tpu.memory_space<vmem>>, vector<8x1xf32>
      tpu.vector_store %arg6[%c0_18, %c0_19], %31 {strides = array<i32>} : memref<8x1xf32, #tpu.memory_space<vmem>>, vector<8x1xf32>,
    } else {
    }
    %c0 = arith.constant 0 : index
    %c0_1 = arith.constant 0 : index
    %3 = vector.load %arg2[%c0, %c0_1] : memref<8x32xf32, #tpu.memory_space<vmem>>, vector<8x32xf32>
    %c0_2 = arith.constant 0 : index
    %c0_3 = arith.constant 0 : index
    %4 = vector.load %arg3[%c0_2, %c0_3] : memref<8x32xf32, #tpu.memory_space<vmem>>, vector<8x32xf32>
    %c0_4 = arith.constant 0 : index
    %c0_5 = arith.constant 0 : index
    %5 = vector.load %arg4[%c0_4, %c0_5] : memref<8x1xf32, #tpu.memory_space<vmem>>, vector<8x1xf32>
    %6 = arith.subf %3, %4 : vector<8x32xf32>
    %cst = arith.constant 9.99999997E-7 : f32
    %7 = vector.broadcast %cst : f32 to vector<8x32xf32>
    %8 = arith.addf %6, %7 : vector<8x32xf32>
    %9 = arith.mulf %8, %8 : vector<8x32xf32>
    %cst_6 = arith.constant dense<0.000000e+00> : vector<8xf32>
    %10 = vector.multi_reduction <add>, %9, %cst_6 [1] : vector<8x32xf32> to vector<8xf32>
    %11 = vector.shape_cast %10 : vector<8xf32> to vector<8x1xf32>
    %12 = math.sqrt %11 : vector<8x1xf32>
    %cst_7 = arith.constant 5.000000e-01 : f32
    %13 = vector.broadcast %cst_7 : f32 to vector<8x1xf32>
    %14 = arith.mulf %13, %5 : vector<8x1xf32>
    %15 = arith.mulf %14, %11 : vector<8x1xf32>
    %cst_8 = arith.constant 1.000000e+00 : f32
    %16 = vector.broadcast %cst_8 : f32 to vector<8x1xf32>
    %17 = arith.subf %16, %5 : vector<8x1xf32>
    %cst_9 = arith.constant 1.000000e+00 : f32
    %18 = vector.broadcast %cst_9 : f32 to vector<8x1xf32>
    %19 = arith.subf %18, %12 : vector<8x1xf32>
    %cst_10 = arith.constant 0.000000e+00 : f32
    %20 = vector.broadcast %cst_10 : f32 to vector<8x1xf32>
    %21 = arith.maximumf %19, %20 : vector<8x1xf32>
    %22 = arith.mulf %21, %21 : vector<8x1xf32>
    %23 = arith.mulf %17, %22 : vector<8x1xf32>
    %24 = arith.addf %15, %23 : vector<8x1xf32>
    %c0_11 = arith.constant 0 : index
    %c0_12 = arith.constant 0 : index
    %25 = vector.load %arg6[%c0_11, %c0_12] : memref<8x1xf32, #tpu.memory_space<vmem>>, vector<8x1xf32>
    %26 = arith.addf %25, %24 : vector<8x1xf32>
    %c0_13 = arith.constant 0 : index
    %c0_14 = arith.constant 0 : index
    %27 = vector.load %arg6[%c0_13, %c0_14] : memref<8x1xf32, #tpu.memory_space<vmem>>, vector<8x1xf32>
    tpu.vector_store %arg6[%c0_13, %c0_14], %26 {strides = array<i32>} : memref<8x1xf32, #tpu.memory_space<vmem>>, vector<8x1xf32>,
    %c0_i32_15 = arith.constant 0 : i32
    %28 = arith.cmpi eq, %arg1, %c0_i32_15 : i32
    %29 = arith.extui %28 : i1 to i32
    %c0_i32_16 = arith.constant 0 : i32
    %30 = arith.cmpi ne, %29, %c0_i32_16 : i32
    scf.if %30 {
      %c0_17 = arith.constant 0 : index
      %c0_18 = arith.constant 0 : index
      %31 = vector.load %arg6[%c0_17, %c0_18] : memref<8x1xf32, #tpu.memory_space<vmem>>, vector<8x1xf32>
      %32 = vector.shape_cast %31 : vector<8x1xf32> to vector<1x8x1xf32>
      %cst_19 = arith.constant dense<0.000000e+00> : vector<1xf32>
      %33 = vector.multi_reduction <add>, %32, %cst_19 [1, 2] : vector<1x8x1xf32> to vector<1xf32>
      %34 = vector.shape_cast %33 : vector<1xf32> to vector<1x1x1xf32>
      %35 = vector.extract %34[0, 0, 0] : f32 from vector<1x1x1xf32>
      %36 = vector.broadcast %35 : f32 to vector<1x1xf32>
      %c0_20 = arith.constant 0 : index
      %c0_21 = arith.constant 0 : index
      %37 = vector.load %arg5[%c0_20, %c0_21] : memref<1x1xf32, #tpu.memory_space<vmem>>, vector<1x1xf32>
      tpu.vector_store %arg5[%c0_20, %c0_21], %36 {strides = array<i32>} : memref<1x1xf32, #tpu.memory_space<vmem>>, vector<1x1xf32>,
    } else {
    }
    return
  }
  func.func @transform_0(%arg0: i32, %arg1: i32) -> (i32, i32) {
    %c1_i32 = arith.constant 1 : i32
    %0 = arith.muli %arg0, %c1_i32 : i32
    %1 = arith.addi %0, %arg1 : i32
    %c0_i32 = arith.constant 0 : i32
    %c0_i32_0 = arith.constant 0 : i32
    return %1, %c0_i32 : i32, i32
  }
  func.func @transform_1(%arg0: i32, %arg1: i32) -> (i32, i32) {
    %c1_i32 = arith.constant 1 : i32
    %0 = arith.muli %arg0, %c1_i32 : i32
    %1 = arith.addi %0, %arg1 : i32
    %c0_i32 = arith.constant 0 : i32
    %c0_i32_0 = arith.constant 0 : i32
    return %1, %c0_i32 : i32, i32
  }
  func.func @transform_2(%arg0: i32, %arg1: i32) -> (i32, i32) {
    %c1_i32 = arith.constant 1 : i32
    %0 = arith.muli %arg0, %c1_i32 : i32
    %1 = arith.addi %0, %arg1 : i32
    %c0_i32 = arith.constant 0 : i32
    %c0_i32_0 = arith.constant 0 : i32
    return %1, %c0_i32 : i32, i32
  }
  func.func @transform_3(%arg0: i32, %arg1: i32) -> (i32, i32) {
    %c0_i32 = arith.constant 0 : i32
    %c0_i32_0 = arith.constant 0 : i32
    return %arg0, %c0_i32 : i32, i32
  }
}

</mosaic_0001>

<llo_original>
// kernel: tpu_custom_call.1
$region0: #{tpu_custom_call.1}
  #allocation0 [shape = 'u32[]', space=smem, size = 0x4, offset = 0x4, fixed_abs, tag = 'smem constant byte address 0x4 - core index']
  #allocation1 [shape = 'u32[144,128]{1,0:T(1,128)}', space=vmem, size = 0x12000, scoped, tag = 'internal scratch']
  #allocation2 [shape = 'f32[8,1]{1,0:T(8,128)}', space=vmem, size = 0x1000, scoped, tag = 'scratch operand']
  %s0 = inlined_call_operand.vmem [shape: f32[8,32], index: 0, kind: input, shape index: {}]
  %s1 = inlined_call_operand.hbm [shape: f32[8,32], index: 1, kind: input, shape index: {}]
  %s2 = inlined_call_operand.vmem [shape: f32[8,1], index: 2, kind: input, shape index: {}]
  %s3 = inlined_call_operand.hbm [shape: f32[1,1], index: 3, kind: output, shape index: {}]
  %s4 = sld [smem:[#allocation0]]
  $region34: #{tpu_custom_call.1} parent=0
    _
  %s6 = ssub.s32 1, %s4
  %s7 = scalar_select 0, %s6, %s4
  $region1: #{tpu_custom_call.1} parent=0
    #allocation3 [shape = 'u8[4096]{0}', space=vmem, size = 0x1000, scoped, tag = 'input window, operand 1, single buffered']
    #allocation4 [shape = 's32[1]{0}', space=sflag, size = 0x4, scoped, tag = 'scoped memory for tpu_custom_call.1']
    #allocation5 [shape = 's32[1]{0}', space=sflag, size = 0x4, scoped, tag = 'scoped memory for tpu_custom_call.1']
    #allocation6 [shape = 'u8[512]{0}', space=vmem, size = 0x400, scoped, tag = 'output window, operand 0, single buffered']
    %8 = vsyncpa [#allocation4], 0
    %9 = vsyncpa [#allocation5], 0
    // Predicated region
    $region2: #{tpu_custom_call.1} parent=1 // pred_check
      _
    $region3: #{tpu_custom_call.1} parent=1 // pred_check_branch
      %11 = sbr.rel (0) target = $region5
    $region4: #{tpu_custom_call.1} parent=1 // pred_region
      %s12 = sadd.s32 0, 0
      %p13 = scmp.lt.s32.totalorder %s12, 0
      %s14 = scalar_select %p13, %s12, 0
      %s15 = smul.addr %s14, 8
      %s16 = scalar_lea.vmem %s0, %s15
      %s17 = sadd.s32 0, 0
    $region5: #{tpu_custom_call.1} parent=1 // pred_fallthru
      _
    // Predicated region
    $region6: #{tpu_custom_call.1} parent=1 // pred_check
      _
    $region7: #{tpu_custom_call.1} parent=1 // pred_check_branch
      %19 = sbr.rel (0) target = $region9
    $region8: #{tpu_custom_call.1} parent=1 // pred_region
      %s20 = sadd.s32 0, 0
      %s22 = ssub.s32 128, 128
      %23 = vsyncadd [#allocation4], %s22
      %s24 = smul.addr %s20, 128
      %s25 = scalar_lea.hbm %s1, %s24
      %s27 = sshll.u32 [#allocation3], 4
      %s28 = int_to_ptr.vmem [resolvable:$true] %s27
      %30 = dma.hbm_to_vmem [thread:$0]  %s25, 128, %s28, [#allocation4]
    $region9: #{tpu_custom_call.1} parent=1 // pred_fallthru
      _
    // Predicated region
    $region10: #{tpu_custom_call.1} parent=1 // pred_check
      _
    $region11: #{tpu_custom_call.1} parent=1 // pred_check_branch
      %32 = sbr.rel (0) target = $region13
    $region12: #{tpu_custom_call.1} parent=1 // pred_region
      %s33 = sadd.s32 0, 0
      %p34 = scmp.lt.s32.totalorder %s33, 0
      %s35 = scalar_select %p34, %s33, 0
      %s36 = smul.addr %s35, 8
      %s37 = scalar_lea.vmem %s2, %s36
      %s38 = sadd.s32 0, 0
    $region13: #{tpu_custom_call.1} parent=1 // pred_fallthru
      _
    // Predicated region
    $region14: #{tpu_custom_call.1} parent=1 // pred_check
      _
    $region15: #{tpu_custom_call.1} parent=1 // pred_check_branch
      %40 = sbr.rel (0) target = $region17
    $region16: #{tpu_custom_call.1} parent=1 // pred_region
      %41 = dma.done [#allocation4], 128
    $region17: #{tpu_custom_call.1} parent=1 // pred_fallthru
      _
    %s42 = sadd.s32 0, 0
    %p43 = scmp.lt.s32.totalorder %s42, 0
    %s44 = scalar_select %p43, %s42, 0
    %s45 = smul.addr %s44, 8
    %s46 = scalar_lea.vmem %s0, %s45
    %s47 = sadd.s32 0, 0
    %p48 = scmp.lt.s32.totalorder %s47, 0
    %s49 = scalar_select %p48, %s47, 0
    %s50 = smul.addr %s49, 8
    %s51 = scalar_lea.vmem %s2, %s50
    %s52 = sadd.s32 0, 0
    %p53 = scmp.lt.s32.totalorder %s52, 0
    %s54 = scalar_select %p53, %s52, 0
    %s55 = smul.addr %s54, 8
    %s56 = scalar_lea.vmem %s0, %s55
    %s57 = sadd.s32 0, 0
    %s58 = sadd.s32 0, 0
    %s59 = sadd.s32 0, 0
    %p60 = scmp.lt.s32.totalorder %s59, 0
    %s61 = scalar_select %p60, %s59, 0
    %s62 = smul.addr %s61, 8
    %s63 = scalar_lea.vmem %s2, %s62
    %s64 = sadd.s32 0, 0
    %p65 = scmp.eq.s32.totalorder 0, 0
    // Predicated region
    $region18: #{tpu_custom_call.1} parent=1 // pred_check
      %p66 = pneg %p65
    $region19: #{tpu_custom_call.1} parent=1 // pred_check_branch
      %68 = sbr.rel (%p66) target = $region21
    $region20: #{tpu_custom_call.1} parent=1 // pred_region
      %vm69 = vcmask 7168
      %70 = vst.msk [vmem:[#allocation2] sm:$0xff] %vm69, 0.0
    $region21: #{tpu_custom_call.1} parent=1 // pred_fallthru
      _
    %v71 = vld [vmem:[%s56] sm:$0xff]
    %v72 = vld [vmem:[#allocation3] sm:$0xff]
    %v73 = vld [vmem:[%s63] sm:$0xff]
    %v74 = vsub.f32 %v71, %v72
    %v75 = vadd.f32 %v74, 1e-06
    %v76 = vmul.f32 %v75, %v75
    %vm77 = vcmask 261120
    %v78 = vsel %vm77, %v76, 0.0
    %79 = vadd.xlane.f32.xlu0 %v78
    %v80 = vpop.xlane.xlu0 %79
    %v81 = vrsqrt.pop %v80
    %v82 = vmul.f32 %v80, %v81
    %vm83 = vcmp.eq.f32.partialorder %v80, inf
    %v84 = vsel %vm83, %v80, %v82
    %vm85 = vcmp.eq.f32.partialorder %v80, 0.0
    %v86 = vand.u32 %v80, 2147483648
    %v87 = vsel %vm85, %v86, %v84
    %v88 = vmul.f32 %v73, 0.5
    %v89 = vmul.f32 %v88, %v80
    %v90 = vsub.f32 1.0, %v73
    %v91 = vsub.f32 1.0, %v87
    %v92 = vmax.f32 %v91, 0.0
    %v93 = vmul.f32 %v92, %v92
    %v94 = vmul.f32 %v90, %v93
    %v95 = vadd.f32 %v89, %v94
    %v96 = vld [vmem:[#allocation2] sm:$0xff]
    %v97 = vadd.f32 %v96, %v95
    %vm98 = vcmask 7168
    %99 = vst.msk [vmem:[#allocation2] sm:$0xff] %vm98, %v97
    // Predicated region
    $region22: #{tpu_custom_call.1} parent=1 // pred_check
      %p100 = pneg %p65
    $region23: #{tpu_custom_call.1} parent=1 // pred_check_branch
      %102 = sbr.rel (%p100) target = $region25
    $region24: #{tpu_custom_call.1} parent=1 // pred_region
      %v103 = vld [vmem:[#allocation2] sm:$0xff]
      %v104 = vsel %vm98, %v103, 0.0
      %105 = vadd.xlane.f32.xlu0 %v104
      %v106 = vpop.xlane.xlu0 %105
      %v107 = vrot.slane %v106, 4
      %v108 = vadd.f32 %v106, %v107
      %v109 = vrot.slane %v108, 2
      %v110 = vadd.f32 %v108, %v109
      %v111 = vrot.slane %v110, 1
      %v112 = vadd.f32 %v110, %v111
      %s113 = vtos %v112
      %v114 = vstv %s113
      %vm115 = vcmask 0
      %116 = vst.msk [vmem:[#allocation6] sm:$0x1] %vm115, %v114
    $region25: #{tpu_custom_call.1} parent=1 // pred_fallthru
      _
    // Predicated region
    $region26: #{tpu_custom_call.1} parent=1 // pred_check
      _
    $region27: #{tpu_custom_call.1} parent=1 // pred_check_branch
      %118 = sbr.rel (0) target = $region29
    $region28: #{tpu_custom_call.1} parent=1 // pred_region
      %s120 = ssub.s32 16, 16
      %121 = vsyncadd [#allocation5], %s120
      %s123 = sshll.u32 [#allocation6], 4
      %s124 = int_to_ptr.vmem [resolvable:$true] %s123
      %126 = dma.vmem_to_hbm [thread:$0]  %s124, 16, %s3, [#allocation5]
    $region29: #{tpu_custom_call.1} parent=1 // pred_fallthru
      _
    // Predicated region
    $region30: #{tpu_custom_call.1} parent=1 // pred_check
      _
    $region31: #{tpu_custom_call.1} parent=1 // pred_check_branch
      %128 = sbr.rel (0) target = $region33
    $region32: #{tpu_custom_call.1} parent=1 // pred_region
      %129 = dma.done [#allocation5], 16
    $region33: #{tpu_custom_call.1} parent=1 // pred_fallthru
      _
    %130 = vsyncpa [#allocation4], 1
    %131 = vsyncpa [#allocation5], 1

</llo_original>
